<compile_context>
chip_gen: v7x
topology: tpu7x:2x2x1
jax: 0.10.0
libtpu: 0.0.40
codegen_flags: <defaults>
</compile_context>

<pallas_src>
import jax
import jax.numpy as jnp
from jax.experimental import pallas as pl
from jax.experimental.pallas import tpu as pltpu


def _round_up(v, m):
    return ((v + m - 1) // m) * m


def _device_info():
    """Generation-aware knobs; conservative (v7x-like) fallbacks."""
    kind = ""
    try:
        kind = jax.devices()[0].device_kind.lower()
    except Exception:
        pass
    try:
        vmem_cap = int(pltpu.get_tpu_info().vmem_capacity_bytes)
    except Exception:
        vmem_cap = 64 * 1024 * 1024          # conservative: v7x VMEM per TC
    # bf16 VPU / EUP exist on v6e and newer; keep elementwise math f32 on older chips.
    bf16_elementwise = not any(t in kind for t in ("v2", "v3", "v4", "v5"))
    # Chips whose TensorCores shard a "parallel" pallas grid axis.
    num_tc = 2 if any(t in kind for t in ("v3", "v4", "v5p", "v7")) else 1
    return vmem_cap, bf16_elementwise, num_tc


def _make_mlp_kernel(compute_dtype, ew_dtype):
    def kernel(x_ref, w1_ref, b1_ref, w2_ref, b2_ref, o_ref):
        # x_ref:  (tm, C_in_p)   token tile (native dtype or bf16)
        # w1_ref: (C_in_p, H_p)  bf16, resident (single-buffered)
        # b1_ref: (1, H_p)       ew_dtype
        # w2_ref: (H_p, C_out_p) bf16, resident (single-buffered)
        # b2_ref: (1, C_out_p)   f32
        x = x_ref[...].astype(compute_dtype)
        h = jnp.dot(x, w1_ref[...], preferred_element_type=jnp.float32)
        # elementwise chain in bf16 on v6e/v7x (2x VALU throughput), f32 on v5e
        h = h.astype(ew_dtype) + b1_ref[...]
        # tanh GELU lowers to the EUP slot (erf is a long VALU polynomial).
        # TODO(synk): torch nn.GELU() defaults to exact erf; tanh approx differs
        # by <~1e-3 per element, inside the bf16 tolerance used here.
        h = jax.nn.gelu(h, approximate=True)
        o = jnp.dot(h.astype(compute_dtype), w2_ref[...],
                    preferred_element_type=jnp.float32)
        o = o + b2_ref[...]
        o_ref[...] = o.astype(o_ref.dtype)
    return kernel


def _vmem_estimate_bytes(tm, c_in, hid, c_out, x_bytes, o_bytes, cbytes, ew_bytes):
    return (
        2 * tm * c_in * x_bytes               # x tiles (double-buffered)
        + 2 * tm * c_out * o_bytes            # output tiles (double-buffered)
        + c_in * hid * cbytes + hid * ew_bytes    # fc1 W + b (resident)
        + hid * c_out * cbytes + c_out * 4        # fc2 W + b (resident)
        + tm * hid * 4                        # f32 fc1 accumulator
        + tm * hid * ew_bytes                 # GELU intermediate
        + tm * c_out * 4                      # f32 fc2 accumulator
    )


def mlp_pallas(x, w1, b1, w2, b2, *, tm=512, compute_dtype=jnp.bfloat16,
               out_dtype=None):
    """x: [B, N, C_in]; w1: [C_in, H]; b1: [H]; w2: [H, C_out]; b2: [C_out]."""
    B, N, C_in = x.shape
    H = w1.shape[1]
    C_out = w2.shape[1]
    M = B * N
    out_dtype = x.dtype if out_dtype is None else out_dtype

    vmem_cap, bf16_ew, num_tc = _device_info()
    ew_dtype = compute_dtype if bf16_ew else jnp.float32
    vmem_budget = int(0.70 * vmem_cap)     # tile-selection budget ...
    vmem_limit = int(0.80 * vmem_cap)      # ... unified with the compiler cap

    cbytes = jnp.dtype(compute_dtype).itemsize
    ew_bytes = jnp.dtype(ew_dtype).itemsize
    obytes = jnp.dtype(out_dtype).itemsize

    # --- channel (lane) padding only where correctness / lane-density needs it
    C_in_p = _round_up(C_in, 128)
    H_p = _round_up(H, 128)
    C_out_p = _round_up(C_out, 128)

    x2d = x.reshape(M, C_in)
    if C_in_p != C_in:
        # padding materializes a copy anyway -> fuse the bf16 cast into it
        x2d = jnp.pad(x2d, ((0, 0), (0, C_in_p - C_in))).astype(compute_dtype)
    # otherwise x streams in its native dtype and is cast per-tile in-kernel
    x_bytes = jnp.dtype(x2d.dtype).itemsize

    w1p = jnp.pad(w1, ((0, C_in_p - C_in), (0, H_p - H))).astype(compute_dtype)
    w2p = jnp.pad(w2, ((0, H_p - H), (0, C_out_p - C_out))).astype(compute_dtype)
    b1p = jnp.pad(b1, (0, H_p - H)).astype(ew_dtype).reshape(1, H_p)
    b2p = jnp.pad(b2, (0, C_out_p - C_out)).astype(jnp.float32).reshape(1, C_out_p)

    # --- token tile selection -----------------------------------------------
    def fits(t):
        return _vmem_estimate_bytes(t, C_in_p, H_p, C_out_p,
                                    x_bytes, obytes, cbytes, ew_bytes) <= vmem_budget

    tm_eff = _round_up(min(max(tm, 16), max(M, 16)), 16)   # 16: bf16 sublane pack
    while tm_eff < 1024 and M >= 2 * tm_eff and fits(2 * tm_eff):
        tm_eff *= 2                                        # grow to 1024 if VMEM allows
    while tm_eff > 16 and not fits(tm_eff):
        tm_eff = _round_up(max(tm_eff // 2, 16), 16)

    # Multi-TensorCore chips shard the "parallel" grid axis: keep the split even.
    # (No ">=2 steps" shrink on single-TC v5e/v6e: the grid is a serial loop there.)
    if num_tc >= 2 and M > 16:
        gm = pl.cdiv(M, tm_eff)
        if gm % num_tc != 0:
            gm_t = max(_round_up(gm, num_tc), num_tc)
            tm_bal = _round_up(pl.cdiv(M, gm_t), 16)
            if tm_bal >= 16 and pl.cdiv(M, tm_bal) % num_tc == 0 and fits(tm_bal):
                tm_eff = tm_bal

    grid_m = pl.cdiv(M, tm_eff)   # ragged last block handled by Pallas masking

    resident = pl.Buffered(1)     # constant-index operands: one VMEM copy
    cost = pl.CostEstimate(
        flops=2 * M * (C_in_p * H_p + H_p * C_out_p),
        transcendentals=M * H_p,
        bytes_accessed=(M * C_in_p * x_bytes
                        + C_in_p * H_p * cbytes + H_p * ew_bytes
                        + H_p * C_out_p * cbytes + C_out_p * 4
                        + M * C_out_p * obytes),
    )

    out2d = pl.pallas_call(
        _make_mlp_kernel(compute_dtype, ew_dtype),
        out_shape=jax.ShapeDtypeStruct((M, C_out_p), out_dtype),
        grid_spec=pltpu.PrefetchScalarGridSpec(
            num_scalar_prefetch=0,
            grid=(grid_m,),
            in_specs=[
                # TODO(synk): consider pl.Buffered(3) here on v7x if profiling
                # shows exposed DMA at small channel widths.
                pl.BlockSpec((tm_eff, C_in_p), lambda i: (i, 0)),
                pl.BlockSpec((C_in_p, H_p), lambda i: (0, 0), pipeline_mode=resident),
                pl.BlockSpec((1, H_p), lambda i: (0, 0), pipeline_mode=resident),
                pl.BlockSpec((H_p, C_out_p), lambda i: (0, 0), pipeline_mode=resident),
                pl.BlockSpec((1, C_out_p), lambda i: (0, 0), pipeline_mode=resident),
            ],
            out_specs=pl.BlockSpec((tm_eff, C_out_p), lambda i: (i, 0)),
        ),
        compiler_params=pltpu.CompilerParams(
            dimension_semantics=("parallel",),
            vmem_limit_bytes=vmem_limit,
        ),
        cost_estimate=cost,
    )(x2d, w1p, b1p, w2p, b2p)

    if C_out_p != C_out:
        out2d = out2d[:, :C_out]
    return out2d.reshape(B, N, C_out)


def init_mlp_params(key, in_features, hidden_features, out_features, dtype=jnp.float32):
    """Deterministic synthetic parameters (PyTorch nn.Linear-style uniform init),
    stored as [in, out] so the kernel computes x @ W."""
    k1, k2, k3, k4 = jax.random.split(key, 4)
    bound1 = 1.0 / (in_features ** 0.5)
    bound2 = 1.0 / (hidden_features ** 0.5)
    w1 = jax.random.uniform(k1, (in_features, hidden_features), dtype, -bound1, bound1)
    b1 = jax.random.uniform(k2, (hidden_features,), dtype, -bound1, bound1)
    w2 = jax.random.uniform(k3, (hidden_features, out_features), dtype, -bound2, bound2)
    b2 = jax.random.uniform(k4, (out_features,), dtype, -bound2, bound2)
    return w1, b1, w2, b2


if __name__ == "__main__":
    # Small shapes consistent with the module's MLP: [B, N, C] tokens, hidden = 2C.
    # N is deliberately NOT a multiple of the tile size to exercise the ragged
    # (masked) last token block.
    B, N = 2, 20
    C_in, Hid, C_out = 32, 64, 32

    key = jax.random.PRNGKey(0)
    kx, kp = jax.random.split(key)
    x = jax.random.normal(kx, (B, N, C_in), jnp.float32)
    w1, b1, w2, b2 = init_mlp_params(kp, C_in, Hid, C_out)

    y = mlp_pallas(x, w1, b1, w2, b2)
    jax.block_until_ready(y)

    # Exact-erf f32 reference (torch nn.GELU default); the kernel runs bf16
    # matmuls with f32 accumulation and a tanh GELU, hence the loose tolerance.
    ref = jax.nn.gelu(x @ w1 + b1, approximate=False) @ w2 + b2
    assert y.shape == (B, N, C_out)
    max_err = float(jnp.max(jnp.abs(y - ref)))
    assert jnp.allclose(y, ref, atol=4e-2, rtol=4e-2), max_err

    print("KERNEL_OK")
</pallas_src>

<mosaic_0001>
module attributes {stable_mosaic.version = 11 : i64} {
  func.func @kernel(%arg0: i32, %arg1: memref<48x128xbf16, #tpu.memory_space<vmem>>, %arg2: memref<128x128xbf16, #tpu.memory_space<vmem>>, %arg3: memref<1x128xbf16, #tpu.memory_space<vmem>>, %arg4: memref<128x128xbf16, #tpu.memory_space<vmem>>, %arg5: memref<1x128xf32, #tpu.memory_space<vmem>>, %arg6: memref<48x128xf32, #tpu.memory_space<vmem>>) attributes {dimension_semantics = [#tpu.dimension_semantics<parallel>], iteration_bounds = array<i64: 1>, scalar_prefetch = 0 : i64, scratch_operands = 0 : i64, tpu.core_type = #tpu.core_type<tc>, window_params = [{transform_indices = @transform_0, window_bounds = array<i64: 48, 128>}, {pipeline_mode = #tpu.pipeline_mode<synchronous>, transform_indices = @transform_1, window_bounds = array<i64: 128, 128>}, {pipeline_mode = #tpu.pipeline_mode<synchronous>, transform_indices = @transform_2, window_bounds = array<i64: 1, 128>}, {pipeline_mode = #tpu.pipeline_mode<synchronous>, transform_indices = @transform_3, window_bounds = array<i64: 128, 128>}, {pipeline_mode = #tpu.pipeline_mode<synchronous>, transform_indices = @transform_4, window_bounds = array<i64: 1, 128>}, {transform_indices = @transform_5, window_bounds = array<i64: 48, 128>}]} {
    %c0 = arith.constant 0 : index
    %c0_0 = arith.constant 0 : index
    %0 = vector.load %arg1[%c0, %c0_0] : memref<48x128xbf16, #tpu.memory_space<vmem>>, vector<48x128xbf16>
    %c0_1 = arith.constant 0 : index
    %c0_2 = arith.constant 0 : index
    %1 = vector.load %arg2[%c0_1, %c0_2] : memref<128x128xbf16, #tpu.memory_space<vmem>>, vector<128x128xbf16>
    %cst = arith.constant dense<0.000000e+00> : vector<48x128xf32>
    %2 = tpu.matmul %0, %1, %cst {dimension_numbers = #tpu.dot_dimension_numbers<[1], [0], [0], [1], [0, 0, 1, 1], [], []>} : vector<48x128xbf16>, vector<128x128xbf16>, vector<48x128xf32> -> vector<48x128xf32>
    %3 = arith.truncf %2 : vector<48x128xf32> to vector<48x128xbf16>
    %c0_3 = arith.constant 0 : index
    %c0_4 = arith.constant 0 : index
    %4 = vector.load %arg3[%c0_3, %c0_4] : memref<1x128xbf16, #tpu.memory_space<vmem>>, vector<1x128xbf16>
    %5 = vector.broadcast %4 : vector<1x128xbf16> to vector<48x128xbf16>
    %6 = arith.addf %3, %5 : vector<48x128xbf16>
    %7 = arith.mulf %6, %6 : vector<48x128xbf16>
    %8 = arith.mulf %6, %7 : vector<48x128xbf16>
    %cst_5 = arith.constant 4.467770e-02 : bf16
    %9 = vector.broadcast %cst_5 : bf16 to vector<48x128xbf16>
    %10 = arith.mulf %9, %8 : vector<48x128xbf16>
    %11 = arith.addf %6, %10 : vector<48x128xbf16>
    %cst_6 = arith.constant 7.968750e-01 : bf16
    %12 = vector.broadcast %cst_6 : bf16 to vector<48x128xbf16>
    %13 = arith.mulf %12, %11 : vector<48x128xbf16>
    %14 = math.tanh %13 : vector<48x128xbf16>
    %cst_7 = arith.constant 1.000000e+00 : bf16
    %15 = vector.broadcast %cst_7 : bf16 to vector<48x128xbf16>
    %16 = arith.addf %15, %14 : vector<48x128xbf16>
    %cst_8 = arith.constant 5.000000e-01 : bf16
    %17 = vector.broadcast %cst_8 : bf16 to vector<48x128xbf16>
    %18 = arith.mulf %17, %16 : vector<48x128xbf16>
    %19 = arith.mulf %6, %18 : vector<48x128xbf16>
    %c0_9 = arith.constant 0 : index
    %c0_10 = arith.constant 0 : index
    %20 = vector.load %arg4[%c0_9, %c0_10] : memref<128x128xbf16, #tpu.memory_space<vmem>>, vector<128x128xbf16>
    %cst_11 = arith.constant dense<0.000000e+00> : vector<48x128xf32>
    %21 = tpu.matmul %19, %20, %cst_11 {dimension_numbers = #tpu.dot_dimension_numbers<[1], [0], [0], [1], [0, 0, 1, 1], [], []>} : vector<48x128xbf16>, vector<128x128xbf16>, vector<48x128xf32> -> vector<48x128xf32>
    %c0_12 = arith.constant 0 : index
    %c0_13 = arith.constant 0 : index
    %22 = vector.load %arg5[%c0_12, %c0_13] : memref<1x128xf32, #tpu.memory_space<vmem>>, vector<1x128xf32>
    %23 = vector.broadcast %22 : vector<1x128xf32> to vector<48x128xf32>
    %24 = arith.addf %21, %23 : vector<48x128xf32>
    %c0_14 = arith.constant 0 : index
    %c0_15 = arith.constant 0 : index
    %25 = vector.load %arg6[%c0_14, %c0_15] : memref<48x128xf32, #tpu.memory_space<vmem>>, vector<48x128xf32>
    tpu.vector_store %arg6[%c0_14, %c0_15], %24 {strides = array<i32>} : memref<48x128xf32, #tpu.memory_space<vmem>>, vector<48x128xf32>,
    return
  }
  func.func @transform_0(%arg0: i32) -> (i32, i32) {
    %c0_i32 = arith.constant 0 : i32
    %c0_i32_0 = arith.constant 0 : i32
    return %arg0, %c0_i32 : i32, i32
  }
  func.func @transform_1(%arg0: i32) -> (i32, i32) {
    %c0_i32 = arith.constant 0 : i32
    %c0_i32_0 = arith.constant 0 : i32
    %c0_i32_1 = arith.constant 0 : i32
    return %c0_i32, %c0_i32_0 : i32, i32
  }
  func.func @transform_2(%arg0: i32) -> (i32, i32) {
    %c0_i32 = arith.constant 0 : i32
    %c0_i32_0 = arith.constant 0 : i32
    %c0_i32_1 = arith.constant 0 : i32
    return %c0_i32, %c0_i32_0 : i32, i32
  }
  func.func @transform_3(%arg0: i32) -> (i32, i32) {
    %c0_i32 = arith.constant 0 : i32
    %c0_i32_0 = arith.constant 0 : i32
    %c0_i32_1 = arith.constant 0 : i32
    return %c0_i32, %c0_i32_0 : i32, i32
  }
  func.func @transform_4(%arg0: i32) -> (i32, i32) {
    %c0_i32 = arith.constant 0 : i32
    %c0_i32_0 = arith.constant 0 : i32
    %c0_i32_1 = arith.constant 0 : i32
    return %c0_i32, %c0_i32_0 : i32, i32
  }
  func.func @transform_5(%arg0: i32) -> (i32, i32) {
    %c0_i32 = arith.constant 0 : i32
    %c0_i32_0 = arith.constant 0 : i32
    return %arg0, %c0_i32 : i32, i32
  }
}

</mosaic_0001>

<llo_original>
// kernel: tpu_custom_call.1
$region0: #{tpu_custom_call.1}
  #allocation0 [shape = 'u32[]', space=smem, size = 0x4, offset = 0x4, fixed_abs, tag = 'smem constant byte address 0x4 - core index']
  #allocation1 [shape = 'u32[144,128]{1,0:T(1,128)}', space=vmem, size = 0x12000, scoped, tag = 'internal scratch']
  %s0 = inlined_call_operand.hbm [shape: bf16[40,128], index: 0, kind: input, shape index: {}]
  %s1 = inlined_call_operand.hbm [shape: bf16[128,128], index: 1, kind: input, shape index: {}]
  %s2 = inlined_call_operand.vmem [shape: bf16[1,128], index: 2, kind: input, shape index: {}]
  %s3 = inlined_call_operand.hbm [shape: bf16[128,128], index: 3, kind: input, shape index: {}]
  %s4 = inlined_call_operand.vmem [shape: f32[1,128], index: 4, kind: input, shape index: {}]
  %s5 = inlined_call_operand.hbm [shape: f32[40,128], index: 5, kind: output, shape index: {}]
  %s6 = sld [smem:[#allocation0]]
  $region42: #{tpu_custom_call.1} parent=0
    _
  %s8 = ssub.s32 1, %s6
  %s9 = scalar_select 0, %s8, %s6
  $region1: #{tpu_custom_call.1} parent=0
    #allocation2 [shape = 'u8[12288]{0}', space=vmem, size = 0x3000, scoped, tag = 'input window, operand 0, single buffered']
    #allocation3 [shape = 's32[1]{0}', space=sflag, size = 0x4, scoped, tag = 'scoped memory for tpu_custom_call.1']
    #allocation4 [shape = 's32[1]{0}', space=sflag, size = 0x4, scoped, tag = 'scoped memory for tpu_custom_call.1']
    #allocation5 [shape = 'u8[32768]{0}', space=vmem, size = 0x8000, scoped, tag = 'input window, operand 1, single buffered']
    #allocation6 [shape = 's32[1]{0}', space=sflag, size = 0x4, scoped, tag = 'scoped memory for tpu_custom_call.1']
    #allocation7 [shape = 'u8[32768]{0}', space=vmem, size = 0x8000, scoped, tag = 'input window, operand 3, single buffered']
    #allocation8 [shape = 'u8[24576]{0}', space=vmem, size = 0x6000, scoped, tag = 'output window, operand 0, single buffered']
    %10 = vsyncpa [#allocation3], 0
    %11 = vsyncpa [#allocation6], 0
    %12 = vsyncpa [#allocation4], 0
    // Predicated region
    $region2: #{tpu_custom_call.1} parent=1 // pred_check
      _
    $region3: #{tpu_custom_call.1} parent=1 // pred_check_branch
      %14 = sbr.rel (0) target = $region5
    $region4: #{tpu_custom_call.1} parent=1 // pred_region
      %s16 = ssub.s32 384, 320
      %17 = vsyncadd [#allocation3], %s16
      %s18 = sshll.u32 [#allocation2], 4
      %s19 = int_to_ptr.vmem [resolvable:$true] %s18
      %24 = dma.hbm_to_vmem [thread:$0]  %s0, 320, %s19, [#allocation3], 64, 64, 4
    $region5: #{tpu_custom_call.1} parent=1 // pred_fallthru
      _
    // Predicated region
    $region6: #{tpu_custom_call.1} parent=1 // pred_check
      _
    $region7: #{tpu_custom_call.1} parent=1 // pred_check_branch
      %26 = sbr.rel (0) target = $region9
    $region8: #{tpu_custom_call.1} parent=1 // pred_region
      %s28 = ssub.s32 1024, 1024
      %29 = vsyncadd [#allocation6], %s28
      %s30 = sshll.u32 [#allocation5], 4
      %s31 = int_to_ptr.vmem [resolvable:$true] %s30
      %36 = dma.hbm_to_vmem [thread:$0]  %s1, 1024, %s31, [#allocation6], 64, 64, 4
    $region9: #{tpu_custom_call.1} parent=1 // pred_fallthru
      _
    // Predicated region
    $region10: #{tpu_custom_call.1} parent=1 // pred_check
      _
    $region11: #{tpu_custom_call.1} parent=1 // pred_check_branch
      %38 = sbr.rel (0) target = $region13
    $region12: #{tpu_custom_call.1} parent=1 // pred_region
      _
    $region13: #{tpu_custom_call.1} parent=1 // pred_fallthru
      _
    // Predicated region
    $region14: #{tpu_custom_call.1} parent=1 // pred_check
      _
    $region15: #{tpu_custom_call.1} parent=1 // pred_check_branch
      %40 = sbr.rel (0) target = $region17
    $region16: #{tpu_custom_call.1} parent=1 // pred_region
      %s42 = ssub.s32 1024, 1024
      %43 = vsyncadd [#allocation6], %s42
      %s44 = sshll.u32 [#allocation7], 4
      %s45 = int_to_ptr.vmem [resolvable:$true] %s44
      %50 = dma.hbm_to_vmem [thread:$0]  %s3, 1024, %s45, [#allocation6], 64, 64, 4
    $region17: #{tpu_custom_call.1} parent=1 // pred_fallthru
      _
    // Predicated region
    $region18: #{tpu_custom_call.1} parent=1 // pred_check
      _
    $region19: #{tpu_custom_call.1} parent=1 // pred_check_branch
      %52 = sbr.rel (0) target = $region21
    $region20: #{tpu_custom_call.1} parent=1 // pred_region
      _
    $region21: #{tpu_custom_call.1} parent=1 // pred_fallthru
      _
    // Predicated region
    $region22: #{tpu_custom_call.1} parent=1 // pred_check
      _
    $region23: #{tpu_custom_call.1} parent=1 // pred_check_branch
      %54 = sbr.rel (0) target = $region25
    $region24: #{tpu_custom_call.1} parent=1 // pred_region
      %55 = dma.done [#allocation3], 384
    $region25: #{tpu_custom_call.1} parent=1 // pred_fallthru
      _
    // Predicated region
    $region26: #{tpu_custom_call.1} parent=1 // pred_check
      _
    $region27: #{tpu_custom_call.1} parent=1 // pred_check_branch
      %57 = sbr.rel (0) target = $region29
    $region28: #{tpu_custom_call.1} parent=1 // pred_region
      %58 = dma.done [#allocation6], 1024
    $region29: #{tpu_custom_call.1} parent=1 // pred_fallthru
      _
    // Predicated region
    $region30: #{tpu_custom_call.1} parent=1 // pred_check
      _
    $region31: #{tpu_custom_call.1} parent=1 // pred_check_branch
      %60 = sbr.rel (0) target = $region33
    $region32: #{tpu_custom_call.1} parent=1 // pred_region
      %61 = dma.done [#allocation6], 1024
    $region33: #{tpu_custom_call.1} parent=1 // pred_fallthru
      _
    %v67 = vld [vmem:[#allocation2] sm:$0xf]
    %v68 = vld [vmem:[#allocation2 + $0x4] sm:$0xf]
    %v69 = vld [vmem:[#allocation2 + $0x8] sm:$0xf]
    %v70 = vld [vmem:[#allocation2 + $0xc] sm:$0xf]
    %v71 = vld [vmem:[#allocation2 + $0x10] sm:$0xf]
    %v72 = vld [vmem:[#allocation2 + $0x14] sm:$0xf]
    %v73 = vld [vmem:[#allocation5] sm:$0xf]
    %v74 = vld [vmem:[#allocation5 + $0x4] sm:$0xf]
    %v75 = vld [vmem:[#allocation5 + $0x8] sm:$0xf]
    %v76 = vld [vmem:[#allocation5 + $0xc] sm:$0xf]
    %v77 = vld [vmem:[#allocation5 + $0x10] sm:$0xf]
    %v78 = vld [vmem:[#allocation5 + $0x14] sm:$0xf]
    %v79 = vld [vmem:[#allocation5 + $0x18] sm:$0xf]
    %v80 = vld [vmem:[#allocation5 + $0x1c] sm:$0xf]
    %v81 = vld [vmem:[#allocation5 + $0x20] sm:$0xf]
    %v82 = vld [vmem:[#allocation5 + $0x24] sm:$0xf]
    %v83 = vld [vmem:[#allocation5 + $0x28] sm:$0xf]
    %v84 = vld [vmem:[#allocation5 + $0x2c] sm:$0xf]
    %v85 = vld [vmem:[#allocation5 + $0x30] sm:$0xf]
    %v86 = vld [vmem:[#allocation5 + $0x34] sm:$0xf]
    %v87 = vld [vmem:[#allocation5 + $0x38] sm:$0xf]
    %v88 = vld [vmem:[#allocation5 + $0x3c] sm:$0xf]
    %v95 = vunpack.c.l.b16 %v67
    %v96 = vunpack.c.l.b16 %v68
    %v97 = vunpack.c.l.b16 %v69
    %v98 = vunpack.c.l.b16 %v70
    %v99 = vunpack.c.l.b16 %v71
    %v100 = vunpack.c.l.b16 %v72
    %v101 = vpack.c.b16 %v96, %v95
    %v102 = vpack.c.b16 %v98, %v97
    %v103 = vpack.c.b16 %v100, %v99
    %v123 = vunpack.c.l.b16 %v73
    %v124 = vunpack.c.l.b16 %v74
    %v125 = vunpack.c.l.b16 %v75
    %v126 = vunpack.c.l.b16 %v76
    %v127 = vunpack.c.l.b16 %v77
    %v128 = vunpack.c.l.b16 %v78
    %v129 = vunpack.c.l.b16 %v79
    %v130 = vunpack.c.l.b16 %v80
    %v131 = vunpack.c.l.b16 %v81
    %v132 = vunpack.c.l.b16 %v82
    %v133 = vunpack.c.l.b16 %v83
    %v134 = vunpack.c.l.b16 %v84
    %v135 = vunpack.c.l.b16 %v85
    %v136 = vunpack.c.l.b16 %v86
    %v137 = vunpack.c.l.b16 %v87
    %v138 = vunpack.c.l.b16 %v88
    %v139 = vpack.c.b16 %v124, %v123
    %v140 = vpack.c.b16 %v126, %v125
    %v141 = vpack.c.b16 %v128, %v127
    %v142 = vpack.c.b16 %v130, %v129
    %v143 = vpack.c.b16 %v132, %v131
    %v144 = vpack.c.b16 %v134, %v133
    %v145 = vpack.c.b16 %v136, %v135
    %v146 = vpack.c.b16 %v138, %v137
    %155 = vmatprep.subr.bf16.mxu0 0
    %156 = vmatpush1.bf16.msra.mxu0 %v139
    %157 = vmatprep.subr.bf16.mxu0 0
    %158 = vmatpush1.bf16.msra.mxu0 %v140
    %159 = vmatprep.subr.bf16.mxu0 0
    %160 = vmatpush1.bf16.msra.mxu0 %v141
    %161 = vmatprep.subr.bf16.mxu0 0
    %162 = vmatpush1.bf16.msra.mxu0 %v142
    %163 = vmatprep.subr.bf16.mxu0 0
    %164 = vmatpush1.bf16.msra.mxu0 %v143
    %165 = vmatprep.subr.bf16.mxu0 0
    %166 = vmatpush1.bf16.msra.mxu0 %v144
    %167 = vmatprep.subr.bf16.mxu0 0
    %168 = vmatpush1.bf16.msra.mxu0 %v145
    %169 = vmatprep.subr.bf16.mxu0 0
    %170 = vmatpush1.bf16.msra.mxu0 %v146
    %171 = vmatprep.subr.bf16.mxu0 0
    %172 = vmatpush1.bf16.msra.mxu0 0
    %173 = vmatprep.subr.bf16.mxu0 0
    %174 = vmatpush1.bf16.msra.mxu0 0
    %175 = vmatprep.subr.bf16.mxu0 0
    %176 = vmatpush1.bf16.msra.mxu0 0
    %177 = vmatprep.subr.bf16.mxu0 0
    %178 = vmatpush1.bf16.msra.mxu0 0
    %179 = vmatprep.subr.bf16.mxu0 0
    %180 = vmatpush1.bf16.msra.mxu0 0
    %181 = vmatprep.subr.bf16.mxu0 0
    %182 = vmatpush1.bf16.msra.mxu0 0
    %183 = vmatprep.subr.bf16.mxu0 0
    %184 = vmatpush1.bf16.msra.mxu0 0
    %185 = vmatprep.subr.bf16.mxu0 0
    %186 = vmatpush1.bf16.msra.mxu0 0
    %187 = vmatprep.mubr.bf16.mxu0 0
    %188 = vmatmul.mubr.bf16.gmra.mrb[0].mxu0 %v101
    %v189 = vpop.f32.mrb[0].mxu0
    %v190 = vadd.f32 0.0, %v189
    %v191 = vpop.f32.mrb[0].mxu0
    %v192 = vpop.f32.mrb[0].mxu0
    %v193 = vadd.f32 0.0, %v192
    %v194 = vpop.f32.mrb[0].mxu0
    %195 = vmatprep.mubr.bf16.mxu0 0
    %196 = vmatmul.mubr.bf16.gmra.mrb[0].mxu0 %v102
    %v197 = vpop.f32.mrb[0].mxu0
    %v198 = vadd.f32 0.0, %v197
    %v199 = vpop.f32.mrb[0].mxu0
    %v200 = vpop.f32.mrb[0].mxu0
    %v201 = vadd.f32 0.0, %v200
    %v202 = vpop.f32.mrb[0].mxu0
    %203 = vmatprep.mubr.bf16.mxu0 0
    %204 = vmatmul.mubr.bf16.gmra.mrb[0].mxu0 %v103
    %v205 = vpop.f32.mrb[0].mxu0
    %v206 = vadd.f32 0.0, %v205
    %v207 = vpop.f32.mrb[0].mxu0
    %v208 = vpop.f32.mrb[0].mxu0
    %v209 = vadd.f32 0.0, %v208
    %v210 = vpop.f32.mrb[0].mxu0
    %211 = vdwg.mxu0
    %v212 = vpack.c.bf16 %v193, %v190
    %v213 = vpack.c.bf16 %v201, %v198
    %v214 = vpack.c.bf16 %v209, %v206
    %v215 = vld [vmem:[%s2] sm:$0x1]
    %v217 = vpack.i.b16 %v215, %v215
    %v219 = vlaneseq
    %v220 = vshrl.u32 %v219, 7
    %v221 = vsub.s32 0, %v220
    %v222 = vrot.slane %v217, %v221
    %v223 = vadd.bf16 %v212, %v222
    %v224 = vadd.bf16 %v213, %v222
    %v225 = vadd.bf16 %v214, %v222
    %v226 = vmul.bf16 %v223, %v223
    %v227 = vmul.bf16 %v224, %v224
    %v228 = vmul.bf16 %v225, %v225
    %v229 = vmul.bf16 %v223, %v226
    %v230 = vmul.bf16 %v224, %v227
    %v231 = vmul.bf16 %v225, %v228
    %v232 = vmul.bf16 %v229, 1027030327
    %v233 = vmul.bf16 %v230, 1027030327
    %v234 = vmul.bf16 %v231, 1027030327
    %v235 = vadd.bf16 %v223, %v232
    %v236 = vadd.bf16 %v224, %v233
    %v237 = vadd.bf16 %v225, %v234
    %v238 = vmul.bf16 %v235, 1061961548
    %v239 = vmul.bf16 %v236, 1061961548
    %v240 = vmul.bf16 %v237, 1061961548
    %v241 = vtanh.bf16.pop %v238
    %v242 = vtanh.bf16.pop %v239
    %v243 = vtanh.bf16.pop %v240
    %v244 = vadd.bf16 %v241, 1065369472
    %v245 = vadd.bf16 %v242, 1065369472
    %v246 = vadd.bf16 %v243, 1065369472
    %v247 = vmul.bf16 %v244, 1056980736
    %v248 = vmul.bf16 %v245, 1056980736
    %v249 = vmul.bf16 %v246, 1056980736
    %v250 = vmul.bf16 %v223, %v247
    %v251 = vmul.bf16 %v224, %v248
    %v252 = vmul.bf16 %v225, %v249
    %v253 = vld [vmem:[#allocation7] sm:$0xf]
    %v254 = vld [vmem:[#allocation7 + $0x4] sm:$0xf]
    %v255 = vld [vmem:[#allocation7 + $0x8] sm:$0xf]
    %v256 = vld [vmem:[#allocation7 + $0xc] sm:$0xf]
    %v257 = vld [vmem:[#allocation7 + $0x10] sm:$0xf]
    %v258 = vld [vmem:[#allocation7 + $0x14] sm:$0xf]
    %v259 = vld [vmem:[#allocation7 + $0x18] sm:$0xf]
    %v260 = vld [vmem:[#allocation7 + $0x1c] sm:$0xf]
    %v261 = vld [vmem:[#allocation7 + $0x20] sm:$0xf]
    %v262 = vld [vmem:[#allocation7 + $0x24] sm:$0xf]
    %v263 = vld [vmem:[#allocation7 + $0x28] sm:$0xf]
    %v264 = vld [vmem:[#allocation7 + $0x2c] sm:$0xf]
    %v265 = vld [vmem:[#allocation7 + $0x30] sm:$0xf]
    %v266 = vld [vmem:[#allocation7 + $0x34] sm:$0xf]
    %v267 = vld [vmem:[#allocation7 + $0x38] sm:$0xf]
    %v268 = vld [vmem:[#allocation7 + $0x3c] sm:$0xf]
    %v269 = vld [vmem:[%s4] sm:$0x1]
    %v271 = vlaneseq
    %v272 = vshrl.u32 %v271, 7
    %v273 = vsub.s32 0, %v272
    %v274 = vrot.slane %v269, %v273
    %v292 = vunpack.c.l.b16 %v253
    %v293 = vunpack.c.l.b16 %v254
    %v294 = vunpack.c.l.b16 %v255
    %v295 = vunpack.c.l.b16 %v256
    %v296 = vunpack.c.l.b16 %v257
    %v297 = vunpack.c.l.b16 %v258
    %v298 = vunpack.c.l.b16 %v259
    %v299 = vunpack.c.l.b16 %v260
    %v300 = vunpack.c.l.b16 %v261
    %v301 = vunpack.c.l.b16 %v262
    %v302 = vunpack.c.l.b16 %v263
    %v303 = vunpack.c.l.b16 %v264
    %v304 = vunpack.c.l.b16 %v265
    %v305 = vunpack.c.l.b16 %v266
    %v306 = vunpack.c.l.b16 %v267
    %v307 = vunpack.c.l.b16 %v268
    %v308 = vpack.c.b16 %v293, %v292
    %v309 = vpack.c.b16 %v295, %v294
    %v310 = vpack.c.b16 %v297, %v296
    %v311 = vpack.c.b16 %v299, %v298
    %v312 = vpack.c.b16 %v301, %v300
    %v313 = vpack.c.b16 %v303, %v302
    %v314 = vpack.c.b16 %v305, %v304
    %v315 = vpack.c.b16 %v307, %v306
    %324 = vmatprep.subr.bf16.mxu0 0
    %325 = vmatpush1.bf16.msra.mxu0 %v308
    %326 = vmatprep.subr.bf16.mxu0 0
    %327 = vmatpush1.bf16.msra.mxu0 %v309
    %328 = vmatprep.subr.bf16.mxu0 0
    %329 = vmatpush1.bf16.msra.mxu0 %v310
    %330 = vmatprep.subr.bf16.mxu0 0
    %331 = vmatpush1.bf16.msra.mxu0 %v311
    %332 = vmatprep.subr.bf16.mxu0 0
    %333 = vmatpush1.bf16.msra.mxu0 %v312
    %334 = vmatprep.subr.bf16.mxu0 0
    %335 = vmatpush1.bf16.msra.mxu0 %v313
    %336 = vmatprep.subr.bf16.mxu0 0
    %337 = vmatpush1.bf16.msra.mxu0 %v314
    %338 = vmatprep.subr.bf16.mxu0 0
    %339 = vmatpush1.bf16.msra.mxu0 %v315
    %340 = vmatprep.subr.bf16.mxu0 0
    %341 = vmatpush1.bf16.msra.mxu0 0
    %342 = vmatprep.subr.bf16.mxu0 0
    %343 = vmatpush1.bf16.msra.mxu0 0
    %344 = vmatprep.subr.bf16.mxu0 0
    %345 = vmatpush1.bf16.msra.mxu0 0
    %346 = vmatprep.subr.bf16.mxu0 0
    %347 = vmatpush1.bf16.msra.mxu0 0
    %348 = vmatprep.subr.bf16.mxu0 0
    %349 = vmatpush1.bf16.msra.mxu0 0
    %350 = vmatprep.subr.bf16.mxu0 0
    %351 = vmatpush1.bf16.msra.mxu0 0
    %352 = vmatprep.subr.bf16.mxu0 0
    %353 = vmatpush1.bf16.msra.mxu0 0
    %354 = vmatprep.subr.bf16.mxu0 0
    %355 = vmatpush1.bf16.msra.mxu0 0
    %356 = vmatprep.mubr.bf16.mxu0 0
    %357 = vmatmul.mubr.bf16.gmra.mrb[0].mxu0 %v250
    %v358 = vpop.f32.mrb[0].mxu0
    %v359 = vadd.f32 %v274, %v358
    %v360 = vpop.f32.mrb[0].mxu0
    %v361 = vpop.f32.mrb[0].mxu0
    %v362 = vadd.f32 %v274, %v361
    %v363 = vpop.f32.mrb[0].mxu0
    %364 = vmatprep.mubr.bf16.mxu0 0
    %365 = vmatmul.mubr.bf16.gmra.mrb[0].mxu0 %v251
    %v366 = vpop.f32.mrb[0].mxu0
    %v367 = vadd.f32 %v274, %v366
    %v368 = vpop.f32.mrb[0].mxu0
    %v369 = vpop.f32.mrb[0].mxu0
    %v370 = vadd.f32 %v274, %v369
    %v371 = vpop.f32.mrb[0].mxu0
    %372 = vmatprep.mubr.bf16.mxu0 0
    %373 = vmatmul.mubr.bf16.gmra.mrb[0].mxu0 %v252
    %v374 = vpop.f32.mrb[0].mxu0
    %v375 = vadd.f32 %v274, %v374
    %v376 = vpop.f32.mrb[0].mxu0
    %v377 = vpop.f32.mrb[0].mxu0
    %v378 = vadd.f32 %v274, %v377
    %v379 = vpop.f32.mrb[0].mxu0
    %380 = vdwg.mxu0
    %381 = vst [vmem:[#allocation8] sm:$0xff] %v359
    %382 = vst [vmem:[#allocation8 + $0x8] sm:$0xff] %v362
    %383 = vst [vmem:[#allocation8 + $0x10] sm:$0xff] %v367
    %384 = vst [vmem:[#allocation8 + $0x18] sm:$0xff] %v370
    %385 = vst [vmem:[#allocation8 + $0x20] sm:$0xff] %v375
    %386 = vst [vmem:[#allocation8 + $0x28] sm:$0xff] %v378
    // Predicated region
    $region34: #{tpu_custom_call.1} parent=1 // pred_check
      _
    $region35: #{tpu_custom_call.1} parent=1 // pred_check_branch
      %388 = sbr.rel (0) target = $region37
    $region36: #{tpu_custom_call.1} parent=1 // pred_region
      %s390 = ssub.s32 768, 640
      %391 = vsyncadd [#allocation4], %s390
      %s392 = sshll.u32 [#allocation8], 4
      %s393 = int_to_ptr.vmem [resolvable:$true] %s392
      %398 = dma.vmem_to_hbm [thread:$0]  %s393, 640, %s5, [#allocation4], 128, 128, 8
    $region37: #{tpu_custom_call.1} parent=1 // pred_fallthru
      _
    // Predicated region
    $region38: #{tpu_custom_call.1} parent=1 // pred_check
      _
    $region39: #{tpu_custom_call.1} parent=1 // pred_check_branch
      %400 = sbr.rel (0) target = $region41
    $region40: #{tpu_custom_call.1} parent=1 // pred_region
      %401 = dma.done [#allocation4], 768
    $region41: #{tpu_custom_call.1} parent=1 // pred_fallthru
      _
    %402 = vsyncpa [#allocation3], 1
    %403 = vsyncpa [#allocation6], 1
    %404 = vsyncpa [#allocation4], 1

</llo_original>
